<compile_context>
chip_gen: v6e
topology: v6e:2x2x1
jax: 0.10.0
libtpu: 0.0.40
codegen_flags: <defaults>
</compile_context>

<pallas_src>
import functools

import jax
import jax.numpy as jnp
from jax import lax
from jax.experimental import pallas as pl
from jax.experimental.pallas import tpu as pltpu


# ----------------------------------------------------------------------------
# helpers
# ----------------------------------------------------------------------------
def _round_up(x, m):
    return (x + m - 1) // m * m


def _physical_vmem_bytes():
    try:
        kind = jax.devices()[0].device_kind.lower()
    except Exception:  # pragma: no cover - defensive
        kind = ""
    if "v7" in kind:
        return 64 << 20          # v7x: 64 MiB per TensorCore
    return 128 << 20             # v4 / v5 / v6: 128 MiB


def _vmem_limit_bytes(buffer_bytes):
    """Scoped-VMEM budget derived from the actual buffered tiles (not a fixed cap)."""
    phys = _physical_vmem_bytes()
    return int(min(max(2 * buffer_bytes, 8 << 20), int(phys * 0.75)))


def _table_vmem_budget():
    """Embedding-table-resident fast path threshold (~8 MiB v7x, ~16 MiB else)."""
    return (8 << 20) if _physical_vmem_bytes() == (64 << 20) else (16 << 20)


def _pick_row_tile(n_rows, cap):
    """Row tile: multiple of 8, <= cap, and (when possible) grid >= 2 so both
    v7x TensorCores get work under dimension_semantics=('parallel', ...)."""
    tm = min(cap, _round_up(n_rows, 8))
    if n_rows > 8:
        tm = min(tm, max(8, _round_up((n_rows + 1) // 2, 8)))
    return tm


# ----------------------------------------------------------------------------
# Pallas kernels
# ----------------------------------------------------------------------------
def _text_gather_vmem_kernel(ids_ref, table_ref, o_ref):
    """Gather tm rows from a VMEM-resident [V, D] table (dynamic vector loads).

    ids_ref   : [N_pad] int32 token ids in SMEM (scalar prefetch)
    table_ref : [V, D]  f32 embedding table, resident in VMEM
    o_ref     : [tm, D] f32 output tile (VMEM)
    """
    tm = o_ref.shape[0]
    base = pl.program_id(0) * tm

    def body(r, carry):
        tok = ids_ref[base + r]                               # SMEM scalar read
        o_ref[pl.ds(r, 1), :] = table_ref[pl.ds(tok, 1), :]   # VMEM row gather
        return carry

    lax.fori_loop(0, tm, body, 0, unroll=True)


def _text_gather_hbm_kernel(ids_ref, table_hbm, o_ref, sem):
    """Gather tm rows straight from HBM into the output block (one DMA per row).

    All DMA starts (and all SMEM id reads) are issued before any wait so the
    copies stay in flight together; there is no intermediate VMEM scratch.
    """
    tm = o_ref.shape[0]
    base = pl.program_id(0) * tm

    def start_row(r, carry):
        tok = ids_ref[base + r]                               # id read before any wait
        pltpu.make_async_copy(table_hbm.at[tok], o_ref.at[r], sem.at[r]).start()
        return carry

    def wait_row(r, carry):
        pltpu.make_async_copy(table_hbm.at[0], o_ref.at[r], sem.at[r]).wait()
        return carry

    lax.fori_loop(0, tm, start_row, 0, unroll=True)
    lax.fori_loop(0, tm, wait_row, 0, unroll=True)


def _patch_embed_kernel(x_ref, w_ref, b_ref, o_ref, acc_ref):
    """Patch-embedding tile: [tm, tk]bf16 @ [tk, D]bf16, f32 accumulation over K.

    x_ref: [tm, tk] bf16 flattened patches    w_ref: [tk, D] bf16 weight slab
    b_ref: [1, D]   f32 bias (resident)       o_ref: [tm, D] f32 output
    acc_ref: [tm, D] f32 accumulator scratch (K grid axis is 'arbitrary')
    """
    @pl.when(pl.program_id(1) == 0)
    def _():
        acc_ref[...] = jnp.zeros_like(acc_ref)

    acc_ref[...] += jnp.dot(x_ref[...], w_ref[...],
                            preferred_element_type=jnp.float32)

    @pl.when(pl.program_id(1) == pl.num_programs(1) - 1)
    def _():
        o_ref[...] = (acc_ref[...] + b_ref[...]).astype(o_ref.dtype)


# ----------------------------------------------------------------------------
# Wrappers around pallas_call
# ----------------------------------------------------------------------------
@functools.partial(jax.jit, static_argnums=(2,))
def _text_embed(tokens, table, table_in_vmem):
    """tokens: [B, S] int32, table: [V, D] f32 -> [B, S, D] f32."""
    b, s = tokens.shape
    v, d = table.shape
    n = b * s

    # Clamp ids: neither the dynamic VMEM load nor the HBM DMA is bounds-checked.
    # TODO(synk): surface out-of-range ids instead of silently clamping them.
    ids = jnp.clip(tokens.reshape(n), 0, v - 1).astype(jnp.int32)

    cap = 128 if table_in_vmem else 64        # rows gathered per grid step
    tm = _pick_row_tile(n, cap)
    n_pad = _round_up(n, tm)
    if n_pad != n:
        ids = jnp.pad(ids, (0, n_pad - n))    # pad ids gather row 0, discarded
    grid = (n_pad // tm,)

    if table_in_vmem:
        kernel = _text_gather_vmem_kernel
        in_specs = [pl.BlockSpec((v, d), lambda i, ids_smem: (0, 0))]  # resident table
        scratch = []
        buffer_bytes = 2 * v * d * 4 + 2 * tm * d * 4
        bytes_accessed = int(v * d * 4 + 2 * n_pad * d * 4)
    else:
        kernel = _text_gather_hbm_kernel
        in_specs = [pl.BlockSpec(memory_space=pl.ANY)]                 # table stays in HBM
        scratch = [pltpu.SemaphoreType.DMA((tm,))]
        buffer_bytes = 2 * tm * d * 4
        bytes_accessed = int(2 * n_pad * d * 4)

    out = pl.pallas_call(
        kernel,
        out_shape=jax.ShapeDtypeStruct((n_pad, d), table.dtype),
        grid_spec=pltpu.PrefetchScalarGridSpec(
            num_scalar_prefetch=1,            # ids -> SMEM
            grid=grid,
            in_specs=in_specs,
            out_specs=pl.BlockSpec((tm, d), lambda i, ids_smem: (i, 0)),
            scratch_shapes=scratch),
        compiler_params=pltpu.CompilerParams(
            dimension_semantics=("parallel",),
            vmem_limit_bytes=_vmem_limit_bytes(buffer_bytes)),
        cost_estimate=pl.CostEstimate(
            flops=0, transcendentals=0, bytes_accessed=bytes_accessed),
    )(ids, table)
    return out[:n].reshape(b, s, d)


def text_embedding_path(tokens, table, force_hbm=False):
    v, d = table.shape
    table_bytes = 2 * v * d * jnp.dtype(table.dtype).itemsize   # double-buffered
    table_in_vmem = (not force_hbm) and (table_bytes <= _table_vmem_budget())
    return _text_embed(tokens, table, table_in_vmem)


@functools.partial(jax.jit, static_argnums=(3,))
def _image_embed(image_nchw, w_conv, b_conv, patch):
    """Conv2d(C, D, kernel=stride=patch) + flatten(2).transpose(1, 2) -> [B, P, D].

    Patch extraction, bf16 cast and padding run inside this jit so XLA fuses
    them into a single HBM pass feeding the Pallas MXU matmul.
    TODO(synk): for very large images, fold patch extraction into the image
    BlockSpec (grid over patch rows) instead of a fused XLA transpose.
    """
    b, c, h, w = image_nchw.shape
    d = w_conv.shape[0]
    gh, gw = h // patch, w // patch
    num_patches = gh * gw
    m = b * num_patches
    pd = c * patch * patch

    patches = image_nchw.reshape(b, c, gh, patch, gw, patch)
    patches = patches.transpose(0, 2, 4, 1, 3, 5).reshape(m, pd)
    x_bf = patches.astype(jnp.bfloat16)
    w_bf = w_conv.reshape(d, pd).T.astype(jnp.bfloat16)          # [pd, D]
    b_row = b_conv.reshape(1, d).astype(jnp.float32)

    # K (reduction) tiling: keep the weight fully resident when small, else
    # grid over K with the f32 accumulator (bounds VMEM, matters on v7x).
    tk = pd if (2 * pd * d * 2) <= (8 << 20) else 512
    pd_pad = _round_up(pd, tk)
    if pd_pad != pd:
        x_bf = jnp.pad(x_bf, ((0, 0), (0, pd_pad - pd)))
        w_bf = jnp.pad(w_bf, ((0, pd_pad - pd), (0, 0)))

    tm = _pick_row_tile(m, 512)               # large M tile on every generation
    m_pad = _round_up(m, tm)
    if m_pad != m:
        x_bf = jnp.pad(x_bf, ((0, m_pad - m), (0, 0)))
    grid = (m_pad // tm, pd_pad // tk)

    buffer_bytes = (2 * tm * tk * 2           # x tiles (double buffered)
                    + 2 * tk * d * 2          # weight tiles
                    + 2 * d * 4               # bias
                    + 2 * tm * d * 4          # output tiles
                    + tm * d * 4)             # accumulator scratch
    # TODO(synk): mark the weight/bias BlockSpecs single-buffered
    # (pipeline_mode=pl.Buffered(1)) once that path is stable in this Pallas rev.
    out = pl.pallas_call(
        _patch_embed_kernel,
        out_shape=jax.ShapeDtypeStruct((m_pad, d), jnp.float32),
        grid_spec=pltpu.PrefetchScalarGridSpec(
            num_scalar_prefetch=0,
            grid=grid,
            in_specs=[pl.BlockSpec((tm, tk), lambda i, k: (i, k)),
                      pl.BlockSpec((tk, d), lambda i, k: (k, 0)),
                      pl.BlockSpec((1, d), lambda i, k: (0, 0))],
            out_specs=pl.BlockSpec((tm, d), lambda i, k: (i, 0)),
            scratch_shapes=[pltpu.VMEM((tm, d), jnp.float32)]),
        compiler_params=pltpu.CompilerParams(
            dimension_semantics=("parallel", "arbitrary"),
            vmem_limit_bytes=_vmem_limit_bytes(buffer_bytes)),
        cost_estimate=pl.CostEstimate(
            flops=int(2 * m_pad * pd_pad * d), transcendentals=0,
            bytes_accessed=int(m_pad * pd_pad * 2 + pd_pad * d * 2
                               + m_pad * d * 4 + d * 4)),
    )(x_bf, w_bf, b_row)
    return out[:m].reshape(b, num_patches, d)


def image_embedding_path(image_nchw, w_conv, b_conv, patch):
    return _image_embed(image_nchw, w_conv, b_conv, patch)


def combine_embeddings(embeddings, model_dim):
    """Port of EmbeddingModel.combine_embeddings (truncate + concat)."""
    token_size = sum(int(e.shape[1]) for e in embeddings)
    hidden_states = []
    for e in embeddings:
        max_dim = model_dim - (token_size - int(e.shape[1]))
        if max_dim > 0:
            hidden_states.append(e[:, :max_dim])
        else:
            hidden_states.append(e)
    return jnp.concatenate(hidden_states, axis=1)


def embedding_model_forward(params, data, model_dim):
    """Port of EmbeddingModel.forward.

    `data` is a sequence of samples; each sample is either a single modality
    dict or a list of modality dicts (whose embeddings get combined).
    Identical repeated inputs are embedded only once per forward call.
    """
    cache = {}

    def run_path(d):
        # id() keying is safe here because inputs stay alive for the whole call.
        key = (d["data_type"], id(d["value"]))
        if key in cache:
            return cache[key]
        if d["data_type"] == "text":
            out = text_embedding_path(d["value"], params["text_table"])
        elif d["data_type"] == "image":
            out = image_embedding_path(d["value"], params["img_w"],
                                       params["img_b"], params["patch"])
        else:
            raise ValueError(d["data_type"])
        cache[key] = out
        return out

    def handle_sample(d):
        if isinstance(d, list):
            return combine_embeddings([run_path(x) for x in d], model_dim)
        return run_path(d)

    return [handle_sample(d) for d in data]


# ----------------------------------------------------------------------------
# Main
# ----------------------------------------------------------------------------
if __name__ == "__main__":
    B = 2            # batch
    S = 8            # text sequence length
    V = 256          # vocab size
    D = 128          # embedding width (multiple of 128 -> lane-dense stores)
    C = 4            # image channels
    H = W = 16       # image spatial
    PATCH = 4        # -> 16 patches, patch_dim = 64
    MODEL_DIM = 20   # token budget for combine_embeddings (exercises truncation)

    key = jax.random.PRNGKey(0)
    k_tab, k_w, k_b, k_tok, k_img = jax.random.split(key, 5)

    params = {
        "text_table": jax.random.normal(k_tab, (V, D), dtype=jnp.float32) * 0.02,
        "img_w": jax.random.normal(k_w, (D, C, PATCH, PATCH), dtype=jnp.float32) * 0.02,
        "img_b": jax.random.normal(k_b, (D,), dtype=jnp.float32) * 0.02,
        "patch": PATCH,
    }

    text_tokens = jax.random.randint(k_tok, (B, S), 0, V, dtype=jnp.int32)
    image = jax.random.normal(k_img, (B, C, H, W), dtype=jnp.float32)   # NCHW

    data = [
        [  # multi-modal sample -> combine_embeddings path
            {"data_type": "text", "value": text_tokens},
            {"data_type": "image", "value": image},
        ],
        {"data_type": "text", "value": text_tokens},   # single-modality sample
    ]

    outputs = embedding_model_forward(params, data, model_dim=MODEL_DIM)
    outputs = [jax.block_until_ready(o) for o in outputs]

    # ----- reference check against plain-JAX math -----
    ref_text = params["text_table"][text_tokens]                        # [B,S,D]

    gh, gw = H // PATCH, W // PATCH
    patches = image.reshape(B, C, gh, PATCH, gw, PATCH)
    patches = patches.transpose(0, 2, 4, 1, 3, 5).reshape(B, gh * gw, -1)
    w_mat = params["img_w"].reshape(D, -1).T
    # kernel computes in bf16 -> build a bf16-consistent reference
    ref_img = (patches.astype(jnp.bfloat16).astype(jnp.float32)
               @ w_mat.astype(jnp.bfloat16).astype(jnp.float32)
               + params["img_b"])
    ref_img_f32 = patches @ w_mat + params["img_b"]

    ref_combined = combine_embeddings([ref_text, ref_img], MODEL_DIM)

    assert outputs[0].shape == ref_combined.shape
    assert jnp.allclose(outputs[0], ref_combined, atol=1e-4), "combined mismatch"
    assert jnp.allclose(
        outputs[0],
        combine_embeddings([ref_text, ref_img_f32], MODEL_DIM),
        atol=2e-2), "combined far from f32 reference"
    assert outputs[1].shape == (B, S, D)
    assert jnp.allclose(outputs[1], ref_text, atol=1e-6), "text VMEM gather mismatch"

    # Also exercise the large-vocabulary HBM-DMA gather path explicitly.
    out_text_hbm = jax.block_until_ready(
        text_embedding_path(text_tokens, params["text_table"], force_hbm=True))
    assert jnp.allclose(out_text_hbm, ref_text, atol=1e-6), "text HBM gather mismatch"

    print("KERNEL_OK")
</pallas_src>

<mosaic_0001>
module attributes {stable_mosaic.version = 11 : i64} {
  func.func @_text_gather_vmem_kernel(%arg0: i32, %arg1: memref<16xi32, #tpu.memory_space<smem>>, %arg2: memref<256x128xf32, #tpu.memory_space<vmem>>, %arg3: memref<8x128xf32, #tpu.memory_space<vmem>>) attributes {dimension_semantics = [#tpu.dimension_semantics<parallel>], iteration_bounds = array<i64: 2>, scalar_prefetch = 1 : i64, scratch_operands = 0 : i64, tpu.core_type = #tpu.core_type<tc>, window_params = [{pipeline_mode = #tpu.pipeline_mode<synchronous>, transform_indices = @transform_0, window_bounds = array<i64: 256, 128>}, {transform_indices = @transform_1, window_bounds = array<i64: 8, 128>}]} {
    %c8_i32 = arith.constant 8 : i32
    %0 = arith.muli %arg0, %c8_i32 : i32
    %c0_i32 = arith.constant 0 : i32
    %1 = arith.addi %0, %c0_i32 : i32
    %2 = arith.index_cast %1 : i32 to index
    %3 = memref.load %arg1[%2] : memref<16xi32, #tpu.memory_space<smem>>
    %4 = arith.index_cast %3 : i32 to index
    %c0 = arith.constant 0 : index
    %5 = vector.load %arg2[%4, %c0] : memref<256x128xf32, #tpu.memory_space<vmem>>, vector<1x128xf32>
    %6 = arith.index_cast %c0_i32 : i32 to index
    %c0_0 = arith.constant 0 : index
    %7 = vector.load %arg3[%6, %c0_0] : memref<8x128xf32, #tpu.memory_space<vmem>>, vector<1x128xf32>
    tpu.vector_store %arg3[%6, %c0_0], %5 {strides = array<i32>} : memref<8x128xf32, #tpu.memory_space<vmem>>, vector<1x128xf32>,
    %c1_i32 = arith.constant 1 : i32
    %8 = arith.addi %0, %c1_i32 : i32
    %9 = arith.index_cast %8 : i32 to index
    %10 = memref.load %arg1[%9] : memref<16xi32, #tpu.memory_space<smem>>
    %11 = arith.index_cast %10 : i32 to index
    %c0_1 = arith.constant 0 : index
    %12 = vector.load %arg2[%11, %c0_1] : memref<256x128xf32, #tpu.memory_space<vmem>>, vector<1x128xf32>
    %13 = arith.index_cast %c1_i32 : i32 to index
    %c0_2 = arith.constant 0 : index
    %14 = vector.load %arg3[%13, %c0_2] : memref<8x128xf32, #tpu.memory_space<vmem>>, vector<1x128xf32>
    tpu.vector_store %arg3[%13, %c0_2], %12 {strides = array<i32>} : memref<8x128xf32, #tpu.memory_space<vmem>>, vector<1x128xf32>,
    %c2_i32 = arith.constant 2 : i32
    %15 = arith.addi %0, %c2_i32 : i32
    %16 = arith.index_cast %15 : i32 to index
    %17 = memref.load %arg1[%16] : memref<16xi32, #tpu.memory_space<smem>>
    %18 = arith.index_cast %17 : i32 to index
    %c0_3 = arith.constant 0 : index
    %19 = vector.load %arg2[%18, %c0_3] : memref<256x128xf32, #tpu.memory_space<vmem>>, vector<1x128xf32>
    %20 = arith.index_cast %c2_i32 : i32 to index
    %c0_4 = arith.constant 0 : index
    %21 = vector.load %arg3[%20, %c0_4] : memref<8x128xf32, #tpu.memory_space<vmem>>, vector<1x128xf32>
    tpu.vector_store %arg3[%20, %c0_4], %19 {strides = array<i32>} : memref<8x128xf32, #tpu.memory_space<vmem>>, vector<1x128xf32>,
    %c3_i32 = arith.constant 3 : i32
    %22 = arith.addi %0, %c3_i32 : i32
    %23 = arith.index_cast %22 : i32 to index
    %24 = memref.load %arg1[%23] : memref<16xi32, #tpu.memory_space<smem>>
    %25 = arith.index_cast %24 : i32 to index
    %c0_5 = arith.constant 0 : index
    %26 = vector.load %arg2[%25, %c0_5] : memref<256x128xf32, #tpu.memory_space<vmem>>, vector<1x128xf32>
    %27 = arith.index_cast %c3_i32 : i32 to index
    %c0_6 = arith.constant 0 : index
    %28 = vector.load %arg3[%27, %c0_6] : memref<8x128xf32, #tpu.memory_space<vmem>>, vector<1x128xf32>
    tpu.vector_store %arg3[%27, %c0_6], %26 {strides = array<i32>} : memref<8x128xf32, #tpu.memory_space<vmem>>, vector<1x128xf32>,
    %c4_i32 = arith.constant 4 : i32
    %29 = arith.addi %0, %c4_i32 : i32
    %30 = arith.index_cast %29 : i32 to index
    %31 = memref.load %arg1[%30] : memref<16xi32, #tpu.memory_space<smem>>
    %32 = arith.index_cast %31 : i32 to index
    %c0_7 = arith.constant 0 : index
    %33 = vector.load %arg2[%32, %c0_7] : memref<256x128xf32, #tpu.memory_space<vmem>>, vector<1x128xf32>
    %34 = arith.index_cast %c4_i32 : i32 to index
    %c0_8 = arith.constant 0 : index
    %35 = vector.load %arg3[%34, %c0_8] : memref<8x128xf32, #tpu.memory_space<vmem>>, vector<1x128xf32>
    tpu.vector_store %arg3[%34, %c0_8], %33 {strides = array<i32>} : memref<8x128xf32, #tpu.memory_space<vmem>>, vector<1x128xf32>,
    %c5_i32 = arith.constant 5 : i32
    %36 = arith.addi %0, %c5_i32 : i32
    %37 = arith.index_cast %36 : i32 to index
    %38 = memref.load %arg1[%37] : memref<16xi32, #tpu.memory_space<smem>>
    %39 = arith.index_cast %38 : i32 to index
    %c0_9 = arith.constant 0 : index
    %40 = vector.load %arg2[%39, %c0_9] : memref<256x128xf32, #tpu.memory_space<vmem>>, vector<1x128xf32>
    %41 = arith.index_cast %c5_i32 : i32 to index
    %c0_10 = arith.constant 0 : index
    %42 = vector.load %arg3[%41, %c0_10] : memref<8x128xf32, #tpu.memory_space<vmem>>, vector<1x128xf32>
    tpu.vector_store %arg3[%41, %c0_10], %40 {strides = array<i32>} : memref<8x128xf32, #tpu.memory_space<vmem>>, vector<1x128xf32>,
    %c6_i32 = arith.constant 6 : i32
    %43 = arith.addi %0, %c6_i32 : i32
    %44 = arith.index_cast %43 : i32 to index
    %45 = memref.load %arg1[%44] : memref<16xi32, #tpu.memory_space<smem>>
    %46 = arith.index_cast %45 : i32 to index
    %c0_11 = arith.constant 0 : index
    %47 = vector.load %arg2[%46, %c0_11] : memref<256x128xf32, #tpu.memory_space<vmem>>, vector<1x128xf32>
    %48 = arith.index_cast %c6_i32 : i32 to index
    %c0_12 = arith.constant 0 : index
    %49 = vector.load %arg3[%48, %c0_12] : memref<8x128xf32, #tpu.memory_space<vmem>>, vector<1x128xf32>
    tpu.vector_store %arg3[%48, %c0_12], %47 {strides = array<i32>} : memref<8x128xf32, #tpu.memory_space<vmem>>, vector<1x128xf32>,
    %c7_i32 = arith.constant 7 : i32
    %50 = arith.addi %0, %c7_i32 : i32
    %51 = arith.index_cast %50 : i32 to index
    %52 = memref.load %arg1[%51] : memref<16xi32, #tpu.memory_space<smem>>
    %53 = arith.index_cast %52 : i32 to index
    %c0_13 = arith.constant 0 : index
    %54 = vector.load %arg2[%53, %c0_13] : memref<256x128xf32, #tpu.memory_space<vmem>>, vector<1x128xf32>
    %55 = arith.index_cast %c7_i32 : i32 to index
    %c0_14 = arith.constant 0 : index
    %56 = vector.load %arg3[%55, %c0_14] : memref<8x128xf32, #tpu.memory_space<vmem>>, vector<1x128xf32>
    tpu.vector_store %arg3[%55, %c0_14], %54 {strides = array<i32>} : memref<8x128xf32, #tpu.memory_space<vmem>>, vector<1x128xf32>,
    %c8_i32_15 = arith.constant 8 : i32
    return
  }
  func.func @transform_0(%arg0: i32, %arg1: memref<16xi32, #tpu.memory_space<smem>>) -> (i32, i32) {
    %c0_i32 = arith.constant 0 : i32
    %c0_i32_0 = arith.constant 0 : i32
    %c0_i32_1 = arith.constant 0 : i32
    return %c0_i32, %c0_i32_0 : i32, i32
  }
  func.func @transform_1(%arg0: i32, %arg1: memref<16xi32, #tpu.memory_space<smem>>) -> (i32, i32) {
    %c0_i32 = arith.constant 0 : i32
    %c0_i32_0 = arith.constant 0 : i32
    return %arg0, %c0_i32 : i32, i32
  }
}

</mosaic_0001>

<llo_original>
// kernel: _text_embed.1
$region0: #{_text_embed.1}
  #allocation0 [shape = 'u32[]', space=smem, size = 0x4, offset = 0x4, fixed_abs, tag = 'smem constant byte address 0x4 - core index']
  #allocation1 [shape = 'u32[144,128]{1,0:T(1,128)}', space=vmem, size = 0x12000, scoped, tag = 'internal scratch']
  #allocation2 [shape = 's32[1]{0}', space=sflag, size = 0x4, scoped, tag = 'scoped memory for _text_embed.1']
  #allocation3 [shape = 'u8[512]{0}', space=smem, size = 0x200, scoped, tag = 'prefetched SMEM operand 0']
  %s0 = inlined_call_operand.vmem [shape: s32[16], index: 0, kind: input, shape index: {}]
  %s1 = inlined_call_operand.hbm [shape: f32[256,128], index: 1, kind: input, shape index: {}]
  %s2 = inlined_call_operand.hbm [shape: f32[16,128], index: 2, kind: output, shape index: {}]
  %s3 = sld [smem:[#allocation0]]
  $region41: #{_text_embed.1} parent=0
    _
  %s5 = ssub.s32 1, %s3
  %s6 = scalar_select 0, %s5, %s3
  %s7 = sshll.u32 %s0, 4
  %s8 = int_to_ptr.vmem [resolvable:$true] %s7
  %10 = dma.vmem_to_smem %s8, 16, [#allocation3], [#allocation2]
  %11 = dma.done [#allocation2], 16
  %12 = sfence
  $region1: #{_text_embed.1} parent=0
    #allocation4 [shape = 'u8[131072]{0}', space=vmem, size = 0x20000, scoped, tag = 'input window, operand 1, single buffered']
    #allocation5 [shape = 's32[2]{0}', space=sflag, size = 0x8, scoped, tag = 'scoped memory for _text_embed.1']
    #allocation6 [shape = 's32[2]{0}', space=sflag, size = 0x8, scoped, tag = 'scoped memory for _text_embed.1']
    #allocation7 [shape = 'u8[8192]{0}', space=vmem, size = 0x2000, scoped, tag = 'output window, operand 0']
    %13 = vsyncpa [#allocation5], 0
    %14 = vsyncpa [#allocation6], 0
    %s15 = scalar_lea.sflag [#allocation6], 1
    %16 = vsyncpa %s15, 0
    loop: start=0, step=1, limit=4
    $region2: #{_text_embed.1} parent=1 // loop_pre_header
      _
    $region3: #{_text_embed.1} parent=1 // loop_header
      %s18 = sphi 0, %s22
      %p19 = scmp.ge.s32.totalorder %s18, 4
      %s26 = sphi 0, %s26
      %s28 = sphi 0, %s26
      %s29 = sphi 0, %s28
      %s43 = sphi 0, %s29
      %s49 = sphi 0, %s51
      %s52 = sphi 0, %s49
      %s53 = sphi 0, %s52
      %s69 = sphi 0, %s53
    $region4: #{_text_embed.1} parent=1 // loop_header_branch
      %21 = sbr.rel (%p19) target = $region8
    $region5: #{_text_embed.1} parent=1 // loop_body
      %s23 = ssub.s32 %s18, 1
      %s24 = ssub.s32 %s18, 2
      %s25 = sadd.s32 %s18, 1
      %s27 = sadd.s32 %s26, 1
      %p30 = scmp.eq.s32.totalorder %s18, 1
      %p31 = scmp.ne.s32.totalorder %s26, %s28
      %p32 = scmp.eq.s32.totalorder %s18, 0
      %p33 = por %p31, %p32
      %p34 = scmp.ne.s32.totalorder %s26, %s28
      %p35 = scmp.eq.s32.totalorder %s23, 1
      %p36 = por %p34, %p35
      %p37 = scmp.ne.s32.totalorder %s28, %s29
      %p38 = scmp.eq.s32.totalorder %s23, 0
      %p39 = por %p37, %p38
      %p40 = scmp.ne.s32.totalorder %s28, %s29
      %p41 = scmp.eq.s32.totalorder %s24, 1
      %p42 = por %p40, %p41
      %p44 = scmp.ne.s32.totalorder %s29, %s43
      %p45 = scmp.eq.s32.totalorder %s24, 0
      %p46 = por %p44, %p45
      %s47 = ssub.s32 %s18, %s25
      %p48 = scmp.eq.s32.totalorder %s47, 0
      %s50 = sadd.s32 %s49, 1
      %s51 = scalar_select %p48, %s49, %s50
      %p54 = pneg %p48
      %p55 = scmp.eq.s32.totalorder %s18, 1
      %p56 = por %p54, %p55
      %p57 = scmp.ne.s32.totalorder %s49, %s52
      %p58 = scmp.eq.s32.totalorder %s18, 0
      %p59 = por %p57, %p58
      %p60 = scmp.ne.s32.totalorder %s49, %s52
      %p61 = scmp.eq.s32.totalorder %s23, 1
      %p62 = por %p60, %p61
      %p63 = scmp.ne.s32.totalorder %s52, %s53
      %p64 = scmp.eq.s32.totalorder %s23, 0
      %p65 = por %p63, %p64
      %p66 = scmp.ne.s32.totalorder %s52, %s53
      %p67 = scmp.eq.s32.totalorder %s24, 1
      %p68 = por %p66, %p67
      %p70 = scmp.ne.s32.totalorder %s53, %s69
      %p71 = scmp.eq.s32.totalorder %s24, 0
      %p72 = por %p70, %p71
      %p73 = scmp.le.s32.totalorder 1, %s18
      %p74 = scmp.lt.s32.totalorder %s18, 3
      %p75 = pnand %p73, %p74
      %p76 = pneg %p75
      // Predicated region
      $region9: #{_text_embed.1} parent=5 // pred_check
        _
      $region10: #{_text_embed.1} parent=5 // pred_check_branch
        %78 = sbr.rel (%p75) target = $region12
      $region11: #{_text_embed.1} parent=5 // pred_region
        %s79 = ssub.s32 %s18, 1
        // Predicated region
        $region13: #{_text_embed.1} parent=11 // pred_check
          %p80 = pneg %p39
        $region14: #{_text_embed.1} parent=11 // pred_check_branch
          %82 = sbr.rel (%p80) target = $region16
        $region15: #{_text_embed.1} parent=11 // pred_region
          %s84 = ssub.s32 4096, 4096
          %85 = vsyncadd [#allocation5], %s84
          %s86 = sshll.u32 [#allocation4], 4
          %s87 = int_to_ptr.vmem [resolvable:$true] %s86
          %92 = dma.hbm_to_vmem [thread:$0]  %s1, 4096, %s87, [#allocation5], 128, 128, 8
        $region16: #{_text_embed.1} parent=11 // pred_fallthru
          _
      $region12: #{_text_embed.1} parent=5 // pred_fallthru
        _
      %p93 = scmp.lt.s32.totalorder %s18, 2
      // Predicated region
      $region17: #{_text_embed.1} parent=5 // pred_check
        %p94 = pneg %p93
      $region18: #{_text_embed.1} parent=5 // pred_check_branch
        %96 = sbr.rel (%p94) target = $region20
      $region19: #{_text_embed.1} parent=5 // pred_region
        _
      $region20: #{_text_embed.1} parent=5 // pred_fallthru
        _
      %p97 = scmp.le.s32.totalorder 1, %s18
      %p98 = scmp.lt.s32.totalorder %s18, 3
      %p99 = pnand %p97, %p98
      %p100 = pneg %p99
      // Predicated region
      $region21: #{_text_embed.1} parent=5 // pred_check
        _
      $region22: #{_text_embed.1} parent=5 // pred_check_branch
        %102 = sbr.rel (%p99) target = $region24
      $region23: #{_text_embed.1} parent=5 // pred_region
        %s103 = ssub.s32 %s18, 1
        // Predicated region
        $region25: #{_text_embed.1} parent=23 // pred_check
          %p104 = pneg %p39
        $region26: #{_text_embed.1} parent=23 // pred_check_branch
          %106 = sbr.rel (%p104) target = $region28
        $region27: #{_text_embed.1} parent=23 // pred_region
          %107 = dma.done [#allocation5], 4096
        $region28: #{_text_embed.1} parent=23 // pred_fallthru
          _
        %p108 = pneg %p39
        %p109 = pneg %p36
        %p110 = pneg %p65
        %p111 = pneg %p62
        %s112 = sand.u32 %s52, 1
        %s113 = scalar_lea.sflag [#allocation6], %s112
        %s114 = sand.u32 %s52, 1
        %s115 = smul.addr %s114, 8
        %s116 = scalar_lea.vmem [#allocation7], %s115
        %s117 = smul.u32 %s23, 8
        %s118 = sld [smem:[#allocation3 + %s117]]
        %s119 = scalar_lea.vmem [#allocation4], %s118
        %v120 = vld [vmem:[%s119] sm:$0x1]
        %121 = vst [vmem:[%s116] sm:$0x1] %v120
        %s122 = sadd.s32 %s117, 1
        %s123 = sld [smem:[#allocation3 + %s122]]
        %s124 = scalar_lea.vmem [#allocation4], %s123
        %v125 = vld [vmem:[%s124] sm:$0x1]
        %126 = vst [vmem:[%s116 + $0x1] sm:$0x1] %v125
        %s127 = sadd.s32 %s117, 2
        %s128 = sld [smem:[#allocation3 + %s127]]
        %s129 = scalar_lea.vmem [#allocation4], %s128
        %v130 = vld [vmem:[%s129] sm:$0x1]
        %131 = vst [vmem:[%s116 + $0x2] sm:$0x1] %v130
        %s132 = sadd.s32 %s117, 3
        %s133 = sld [smem:[#allocation3 + %s132]]
        %s134 = scalar_lea.vmem [#allocation4], %s133
        %v135 = vld [vmem:[%s134] sm:$0x1]
        %136 = vst [vmem:[%s116 + $0x3] sm:$0x1] %v135
        %s137 = sadd.s32 %s117, 4
        %s138 = sld [smem:[#allocation3 + %s137]]
        %s139 = scalar_lea.vmem [#allocation4], %s138
        %v140 = vld [vmem:[%s139] sm:$0x1]
        %141 = vst [vmem:[%s116 + $0x4] sm:$0x1] %v140
        %s142 = sadd.s32 %s117, 5
        %s143 = sld [smem:[#allocation3 + %s142]]
        %s144 = scalar_lea.vmem [#allocation4], %s143
        %v145 = vld [vmem:[%s144] sm:$0x1]
        %146 = vst [vmem:[%s116 + $0x5] sm:$0x1] %v145
        %s147 = sadd.s32 %s117, 6
        %s148 = sld [smem:[#allocation3 + %s147]]
        %s149 = scalar_lea.vmem [#allocation4], %s148
        %v150 = vld [vmem:[%s149] sm:$0x1]
        %151 = vst [vmem:[%s116 + $0x6] sm:$0x1] %v150
        %s152 = sadd.s32 %s117, 7
        %s153 = sld [smem:[#allocation3 + %s152]]
        %s154 = scalar_lea.vmem [#allocation4], %s153
        %v155 = vld [vmem:[%s154] sm:$0x1]
        %156 = vst [vmem:[%s116 + $0x7] sm:$0x1] %v155
        %s157 = sand.u32 %s52, 1
        %s158 = scalar_lea.sflag [#allocation6], %s157
        %s159 = sand.u32 %s52, 1
        %s160 = smul.addr %s159, 8
        %s161 = scalar_lea.vmem [#allocation7], %s160
        // Predicated region
        $region29: #{_text_embed.1} parent=23 // pred_check
          %p162 = pneg %p62
        $region30: #{_text_embed.1} parent=23 // pred_check_branch
          %164 = sbr.rel (%p162) target = $region32
        $region31: #{_text_embed.1} parent=23 // pred_region
          %s166 = ssub.s32 128, 128
          %167 = vsyncadd %s158, %s166
          %s168 = smul.addr %s23, 128
          %s169 = scalar_lea.hbm %s2, %s168
          %s171 = sshll.u32 %s161, 4
          %s172 = int_to_ptr.vmem [resolvable:$true] %s171
          %174 = dma.vmem_to_hbm [thread:$0]  %s172, 128, %s169, %s158
        $region32: #{_text_embed.1} parent=23 // pred_fallthru
          _
      $region24: #{_text_embed.1} parent=5 // pred_fallthru
        _
      %p175 = scmp.le.s32.totalorder 2, %s18
      // Predicated region
      $region33: #{_text_embed.1} parent=5 // pred_check
        %p176 = pneg %p175
      $region34: #{_text_embed.1} parent=5 // pred_check_branch
        %178 = sbr.rel (%p176) target = $region36
      $region35: #{_text_embed.1} parent=5 // pred_region
        %s179 = ssub.s32 %s18, 2
        // Predicated region
        $region37: #{_text_embed.1} parent=35 // pred_check
          %p180 = pneg %p68
        $region38: #{_text_embed.1} parent=35 // pred_check_branch
          %182 = sbr.rel (%p180) target = $region40
        $region39: #{_text_embed.1} parent=35 // pred_region
          %s183 = sand.u32 %s53, 1
          %s184 = scalar_lea.sflag [#allocation6], %s183
          %s185 = sand.u32 %s53, 1
          %s186 = smul.addr %s185, 8
          %s187 = scalar_lea.vmem [#allocation7], %s186
          %188 = dma.done %s184, 128
        $region40: #{_text_embed.1} parent=35 // pred_fallthru
          _
      $region36: #{_text_embed.1} parent=5 // pred_fallthru
        _
    $region6: #{_text_embed.1} parent=1 // loop_footer
      %s22 = sadd.s32 1, %s18
    $region7: #{_text_embed.1} parent=1 // loop_footer_branch
      %17 = sbr.rel target = $region3
    $region8: #{_text_embed.1} parent=1 // loop_exit
      _
    %189 = vsyncpa [#allocation5], 1
    %s190 = scalar_lea.sflag [#allocation5], 1
    %191 = vsyncpa %s190, 1
    %192 = vsyncpa [#allocation6], 1
    %s193 = scalar_lea.sflag [#allocation6], 1
    %194 = vsyncpa %s193, 1

</llo_original>
